<compile_context>
chip_gen: v6e
topology: v6e:2x2x1
jax: 0.10.0
libtpu: 0.0.40
codegen_flags: <defaults>
</compile_context>

<pallas_src>
import jax
import jax.numpy as jnp
from jax.experimental import pallas as pl
from jax.experimental.pallas import tpu as pltpu


def vae_encoder_kernel(x_ref, w1_ref, b1_ref, w2_ref, b2_ref, wh_ref, bh_ref, out_ref):
    x = x_ref[...]
    # hidden = relu(linear2(relu(linear(x)))) -- f32 accumulation on the MXU.
    h = jnp.dot(x, w1_ref[...], preferred_element_type=jnp.float32) + b1_ref[...]
    h = jnp.maximum(h, 0.0).astype(w2_ref.dtype)
    h = jnp.dot(h, w2_ref[...], preferred_element_type=jnp.float32) + b2_ref[...]
    h = jnp.maximum(h, 0.0).astype(wh_ref.dtype)
    # Fused [mean | log_var | zero-pad] head: one matmul, one lane-dense store.
    out_ref[...] = (jnp.dot(h, wh_ref[...], preferred_element_type=jnp.float32)
                    + bh_ref[...]).astype(out_ref.dtype)


def prepare_params(params, compute_dtype=jnp.float32):
    """One-time conversion of PyTorch-convention params to kernel layout.

    Weights -> [in, out]; mu/var heads fused and zero-padded to a multiple of
    128 output lanes; biases kept as f32 [1, out] rows.
    """
    hidden_dim = params["w1"].shape[0]
    latent_dim = params["wmu"].shape[0]
    head_dim = 2 * latent_dim
    head_pad = pl.cdiv(head_dim, 128) * 128

    wh = jnp.concatenate([params["wmu"].T, params["wvar"].T], axis=1)  # [H, 2L]
    bh = jnp.concatenate([params["bmu"], params["bvar"]])              # [2L]
    wh = jnp.pad(wh, ((0, 0), (0, head_pad - head_dim)))
    bh = jnp.pad(bh, (0, head_pad - head_dim))

    return {
        "w1": params["w1"].T.astype(compute_dtype),
        "b1": params["b1"].reshape(1, hidden_dim).astype(jnp.float32),
        "w2": params["w2"].T.astype(compute_dtype),
        "b2": params["b2"].reshape(1, hidden_dim).astype(jnp.float32),
        "wh": wh.astype(compute_dtype),
        "bh": bh.reshape(1, head_pad).astype(jnp.float32),
        "latent_dim": latent_dim,
    }


def _round_up(n, m):
    return pl.cdiv(n, m) * m


def vae_encoder(x, prepared, *, block_b=None):
    """x: [B, input_dim]. prepared: output of prepare_params. Returns (mean, log_var)."""
    B, input_dim = x.shape
    hidden_dim = prepared["w1"].shape[1]
    head_pad = prepared["wh"].shape[1]
    latent_dim = prepared["latent_dim"]
    compute_dtype = prepared["w1"].dtype

    if block_b is None:
        # Small batches: one grid step covering the (sublane-rounded) whole batch.
        # Large batches: 128-row tiles -> >=2 grid steps so v7x's two TensorCores
        # both get work via dimension_semantics=("parallel",).
        block_b = 128 if B > 256 else _round_up(B, 8)

    # Ragged batch: zero-pad rows up to a multiple of block_b, slice back after.
    B_pad = _round_up(B, block_b)
    x = x.astype(compute_dtype)
    if B_pad != B:
        x = jnp.pad(x, ((0, B_pad - B), (0, 0)))
    grid = (B_pad // block_b,)

    itemsize = jnp.dtype(compute_dtype).itemsize
    weight_bytes = int((input_dim * hidden_dim + hidden_dim * hidden_dim
                        + hidden_dim * head_pad) * itemsize)
    bias_bytes = int((2 * hidden_dim + head_pad) * 4)
    io_tile_bytes = int(block_b * input_dim * itemsize + block_b * head_pad * 4)

    flops = int(2 * B_pad * (input_dim * hidden_dim + hidden_dim * hidden_dim
                             + hidden_dim * head_pad))
    bytes_accessed = int(weight_bytes + bias_bytes
                         + B_pad * input_dim * itemsize + B_pad * head_pad * 4)

    def _encode(single_buffer_weights):
        def const_spec(shape):
            # Weights/biases never change across grid steps; single-buffer them
            # to halve their VMEM footprint (matters on v7x's 64 MiB VMEM and
            # under v5e's small default scoped-VMEM limit).
            if single_buffer_weights:
                return pl.BlockSpec(shape, lambda i: (0, 0),
                                    pipeline_mode=pl.Buffered(1))
            return pl.BlockSpec(shape, lambda i: (0, 0))

        weight_buf = 1 if single_buffer_weights else 2
        vmem_need = weight_buf * (weight_bytes + bias_bytes) + 2 * io_tile_bytes
        vmem_limit = int(min(64 * 2**20, max(32 * 2**20, 2 * vmem_need)))

        return pl.pallas_call(
            vae_encoder_kernel,
            out_shape=jax.ShapeDtypeStruct((B_pad, head_pad), jnp.float32),
            grid_spec=pltpu.PrefetchScalarGridSpec(
                num_scalar_prefetch=0,
                grid=grid,
                in_specs=[
                    pl.BlockSpec((block_b, input_dim), lambda i: (i, 0)),  # x tile
                    const_spec((input_dim, hidden_dim)),   # w1
                    const_spec((1, hidden_dim)),           # b1
                    const_spec((hidden_dim, hidden_dim)),  # w2
                    const_spec((1, hidden_dim)),           # b2
                    const_spec((hidden_dim, head_pad)),    # fused head weight
                    const_spec((1, head_pad)),             # fused head bias
                ],
                out_specs=pl.BlockSpec((block_b, head_pad), lambda i: (i, 0)),
            ),
            compiler_params=pltpu.CompilerParams(
                dimension_semantics=("parallel",),
                vmem_limit_bytes=vmem_limit),
            cost_estimate=pl.CostEstimate(
                flops=flops, transcendentals=0, bytes_accessed=bytes_accessed),
        )(x, prepared["w1"], prepared["b1"], prepared["w2"], prepared["b2"],
          prepared["wh"], prepared["bh"])

    try:
        head = _encode(True)
    except Exception:
        # Fallback for JAX builds where Buffered(1) single-buffering is rejected.
        head = _encode(False)

    mean = head[:B, :latent_dim]
    log_var = head[:B, latent_dim:2 * latent_dim]
    return mean, log_var


def init_params(key, input_dim, hidden_dim, latent_dim):
    """Deterministic synthetic params, PyTorch nn.Linear convention: W is (out, in)."""
    ks = jax.random.split(key, 8)

    def uniform(k, shape, fan_in):
        bound = 1.0 / jnp.sqrt(fan_in)
        return jax.random.uniform(k, shape, jnp.float32, -bound, bound)

    return {
        "w1": uniform(ks[0], (hidden_dim, input_dim), input_dim),
        "b1": uniform(ks[1], (hidden_dim,), input_dim),
        "w2": uniform(ks[2], (hidden_dim, hidden_dim), hidden_dim),
        "b2": uniform(ks[3], (hidden_dim,), hidden_dim),
        "wmu": uniform(ks[4], (latent_dim, hidden_dim), hidden_dim),
        "bmu": uniform(ks[5], (latent_dim,), hidden_dim),
        "wvar": uniform(ks[6], (latent_dim, hidden_dim), hidden_dim),
        "bvar": uniform(ks[7], (latent_dim,), hidden_dim),
    }


def reference(x, p):
    """Pure-JAX reference mirroring the PyTorch forward."""
    h = jnp.maximum(x @ p["w1"].T + p["b1"], 0.0)
    h = jnp.maximum(h @ p["w2"].T + p["b2"], 0.0)
    return h @ p["wmu"].T + p["bmu"], h @ p["wvar"].T + p["bvar"]


if __name__ == "__main__":
    B, input_dim, hidden_dim, latent_dim = 16, 64, 32, 16
    key = jax.random.PRNGKey(0)
    kx, kp = jax.random.split(key)
    x = jax.random.normal(kx, (B, input_dim), jnp.float32)
    params = init_params(kp, input_dim, hidden_dim, latent_dim)

    ref_mean, ref_logvar = reference(x, params)

    # f32 compute: faithful to the PyTorch module, tight tolerance.
    prep_f32 = prepare_params(params, jnp.float32)
    mean, log_var = vae_encoder(x, prep_f32)
    jax.block_until_ready((mean, log_var))
    assert mean.shape == (B, latent_dim) and log_var.shape == (B, latent_dim)
    assert jnp.allclose(mean, ref_mean, atol=1e-5, rtol=1e-5)
    assert jnp.allclose(log_var, ref_logvar, atol=1e-5, rtol=1e-5)

    # Ragged batch (B not a multiple of 8) exercises the wrapper-side padding.
    Br = 10
    mean_r, logvar_r = vae_encoder(x[:Br], prep_f32)
    jax.block_until_ready((mean_r, logvar_r))
    assert mean_r.shape == (Br, latent_dim) and logvar_r.shape == (Br, latent_dim)
    assert jnp.allclose(mean_r, ref_mean[:Br], atol=1e-5, rtol=1e-5)
    assert jnp.allclose(logvar_r, ref_logvar[:Br], atol=1e-5, rtol=1e-5)

    # bf16 compute (recommended for v6e/v7x MXU), f32 accumulation, loose tolerance.
    prep_bf16 = prepare_params(params, jnp.bfloat16)
    mean16, logvar16 = vae_encoder(x, prep_bf16)
    jax.block_until_ready((mean16, logvar16))
    assert jnp.allclose(mean16, ref_mean, atol=5e-2, rtol=5e-2)
    assert jnp.allclose(logvar16, ref_logvar, atol=5e-2, rtol=5e-2)

    print("KERNEL_OK")
</pallas_src>

<mosaic_0001>
module attributes {stable_mosaic.version = 11 : i64} {
  func.func @vae_encoder_kernel(%arg0: i32, %arg1: memref<16x64xf32, #tpu.memory_space<vmem>>, %arg2: memref<64x32xf32, #tpu.memory_space<vmem>>, %arg3: memref<1x32xf32, #tpu.memory_space<vmem>>, %arg4: memref<32x32xf32, #tpu.memory_space<vmem>>, %arg5: memref<1x32xf32, #tpu.memory_space<vmem>>, %arg6: memref<32x128xf32, #tpu.memory_space<vmem>>, %arg7: memref<1x128xf32, #tpu.memory_space<vmem>>, %arg8: memref<16x128xf32, #tpu.memory_space<vmem>>) attributes {dimension_semantics = [#tpu.dimension_semantics<parallel>], iteration_bounds = array<i64: 1>, scalar_prefetch = 0 : i64, scratch_operands = 0 : i64, tpu.core_type = #tpu.core_type<tc>, window_params = [{transform_indices = @transform_0, window_bounds = array<i64: 16, 64>}, {pipeline_mode = #tpu.pipeline_mode<synchronous>, transform_indices = @transform_1, window_bounds = array<i64: 64, 32>}, {pipeline_mode = #tpu.pipeline_mode<synchronous>, transform_indices = @transform_2, window_bounds = array<i64: 1, 32>}, {pipeline_mode = #tpu.pipeline_mode<synchronous>, transform_indices = @transform_3, window_bounds = array<i64: 32, 32>}, {pipeline_mode = #tpu.pipeline_mode<synchronous>, transform_indices = @transform_4, window_bounds = array<i64: 1, 32>}, {pipeline_mode = #tpu.pipeline_mode<synchronous>, transform_indices = @transform_5, window_bounds = array<i64: 32, 128>}, {pipeline_mode = #tpu.pipeline_mode<synchronous>, transform_indices = @transform_6, window_bounds = array<i64: 1, 128>}, {transform_indices = @transform_7, window_bounds = array<i64: 16, 128>}]} {
    %c0 = arith.constant 0 : index
    %c0_0 = arith.constant 0 : index
    %0 = vector.load %arg1[%c0, %c0_0] : memref<16x64xf32, #tpu.memory_space<vmem>>, vector<16x64xf32>
    %c0_1 = arith.constant 0 : index
    %c0_2 = arith.constant 0 : index
    %1 = vector.load %arg2[%c0_1, %c0_2] : memref<64x32xf32, #tpu.memory_space<vmem>>, vector<64x32xf32>
    %cst = arith.constant dense<0.000000e+00> : vector<16x32xf32>
    %2 = tpu.matmul %0, %1, %cst {dimension_numbers = #tpu.dot_dimension_numbers<[1], [0], [0], [1], [0, 0, 1, 1], [], []>} : vector<16x64xf32>, vector<64x32xf32>, vector<16x32xf32> -> vector<16x32xf32>
    %c0_3 = arith.constant 0 : index
    %c0_4 = arith.constant 0 : index
    %3 = vector.load %arg3[%c0_3, %c0_4] : memref<1x32xf32, #tpu.memory_space<vmem>>, vector<1x32xf32>
    %4 = vector.broadcast %3 : vector<1x32xf32> to vector<16x32xf32>
    %5 = arith.addf %2, %4 : vector<16x32xf32>
    %cst_5 = arith.constant 0.000000e+00 : f32
    %6 = vector.broadcast %cst_5 : f32 to vector<16x32xf32>
    %7 = arith.maximumf %5, %6 : vector<16x32xf32>
    %c0_6 = arith.constant 0 : index
    %c0_7 = arith.constant 0 : index
    %8 = vector.load %arg4[%c0_6, %c0_7] : memref<32x32xf32, #tpu.memory_space<vmem>>, vector<32x32xf32>
    %cst_8 = arith.constant dense<0.000000e+00> : vector<16x32xf32>
    %9 = tpu.matmul %7, %8, %cst_8 {dimension_numbers = #tpu.dot_dimension_numbers<[1], [0], [0], [1], [0, 0, 1, 1], [], []>} : vector<16x32xf32>, vector<32x32xf32>, vector<16x32xf32> -> vector<16x32xf32>
    %c0_9 = arith.constant 0 : index
    %c0_10 = arith.constant 0 : index
    %10 = vector.load %arg5[%c0_9, %c0_10] : memref<1x32xf32, #tpu.memory_space<vmem>>, vector<1x32xf32>
    %11 = vector.broadcast %10 : vector<1x32xf32> to vector<16x32xf32>
    %12 = arith.addf %9, %11 : vector<16x32xf32>
    %cst_11 = arith.constant 0.000000e+00 : f32
    %13 = vector.broadcast %cst_11 : f32 to vector<16x32xf32>
    %14 = arith.maximumf %12, %13 : vector<16x32xf32>
    %c0_12 = arith.constant 0 : index
    %c0_13 = arith.constant 0 : index
    %15 = vector.load %arg6[%c0_12, %c0_13] : memref<32x128xf32, #tpu.memory_space<vmem>>, vector<32x128xf32>
    %cst_14 = arith.constant dense<0.000000e+00> : vector<16x128xf32>
    %16 = tpu.matmul %14, %15, %cst_14 {dimension_numbers = #tpu.dot_dimension_numbers<[1], [0], [0], [1], [0, 0, 1, 1], [], []>} : vector<16x32xf32>, vector<32x128xf32>, vector<16x128xf32> -> vector<16x128xf32>
    %c0_15 = arith.constant 0 : index
    %c0_16 = arith.constant 0 : index
    %17 = vector.load %arg7[%c0_15, %c0_16] : memref<1x128xf32, #tpu.memory_space<vmem>>, vector<1x128xf32>
    %18 = vector.broadcast %17 : vector<1x128xf32> to vector<16x128xf32>
    %19 = arith.addf %16, %18 : vector<16x128xf32>
    %c0_17 = arith.constant 0 : index
    %c0_18 = arith.constant 0 : index
    %20 = vector.load %arg8[%c0_17, %c0_18] : memref<16x128xf32, #tpu.memory_space<vmem>>, vector<16x128xf32>
    tpu.vector_store %arg8[%c0_17, %c0_18], %19 {strides = array<i32>} : memref<16x128xf32, #tpu.memory_space<vmem>>, vector<16x128xf32>,
    return
  }
  func.func @transform_0(%arg0: i32) -> (i32, i32) {
    %c0_i32 = arith.constant 0 : i32
    %c0_i32_0 = arith.constant 0 : i32
    return %arg0, %c0_i32 : i32, i32
  }
  func.func @transform_1(%arg0: i32) -> (i32, i32) {
    %c0_i32 = arith.constant 0 : i32
    %c0_i32_0 = arith.constant 0 : i32
    %c0_i32_1 = arith.constant 0 : i32
    return %c0_i32, %c0_i32_0 : i32, i32
  }
  func.func @transform_2(%arg0: i32) -> (i32, i32) {
    %c0_i32 = arith.constant 0 : i32
    %c0_i32_0 = arith.constant 0 : i32
    %c0_i32_1 = arith.constant 0 : i32
    return %c0_i32, %c0_i32_0 : i32, i32
  }
  func.func @transform_3(%arg0: i32) -> (i32, i32) {
    %c0_i32 = arith.constant 0 : i32
    %c0_i32_0 = arith.constant 0 : i32
    %c0_i32_1 = arith.constant 0 : i32
    return %c0_i32, %c0_i32_0 : i32, i32
  }
  func.func @transform_4(%arg0: i32) -> (i32, i32) {
    %c0_i32 = arith.constant 0 : i32
    %c0_i32_0 = arith.constant 0 : i32
    %c0_i32_1 = arith.constant 0 : i32
    return %c0_i32, %c0_i32_0 : i32, i32
  }
  func.func @transform_5(%arg0: i32) -> (i32, i32) {
    %c0_i32 = arith.constant 0 : i32
    %c0_i32_0 = arith.constant 0 : i32
    %c0_i32_1 = arith.constant 0 : i32
    return %c0_i32, %c0_i32_0 : i32, i32
  }
  func.func @transform_6(%arg0: i32) -> (i32, i32) {
    %c0_i32 = arith.constant 0 : i32
    %c0_i32_0 = arith.constant 0 : i32
    %c0_i32_1 = arith.constant 0 : i32
    return %c0_i32, %c0_i32_0 : i32, i32
  }
  func.func @transform_7(%arg0: i32) -> (i32, i32) {
    %c0_i32 = arith.constant 0 : i32
    %c0_i32_0 = arith.constant 0 : i32
    return %arg0, %c0_i32 : i32, i32
  }
}

module attributes {stable_mosaic.version = 11 : i64} {
  func.func @vae_encoder_kernel(%arg0: i32, %arg1: memref<16x64xf32, #tpu.memory_space<vmem>>, %arg2: memref<64x32xf32, #tpu.memory_space<vmem>>, %arg3: memref<1x32xf32, #tpu.memory_space<vmem>>, %arg4: memref<32x32xf32, #tpu.memory_space<vmem>>, %arg5: memref<1x32xf32, #tpu.memory_space<vmem>>, %arg6: memref<32x128xf32, #tpu.memory_space<vmem>>, %arg7: memref<1x128xf32, #tpu.memory_space<vmem>>, %arg8: memref<16x128xf32, #tpu.memory_space<vmem>>) attributes {dimension_semantics = [#tpu.dimension_semantics<parallel>], iteration_bounds = array<i64: 1>, scalar_prefetch = 0 : i64, scratch_operands = 0 : i64, tpu.core_type = #tpu.core_type<tc>, window_params = [{transform_indices = @transform_0, window_bounds = array<i64: 16, 64>}, {pipeline_mode = #tpu.pipeline_mode<synchronous>, transform_indices = @transform_1, window_bounds = array<i64: 64, 32>}, {pipeline_mode = #tpu.pipeline_mode<synchronous>, transform_indices = @transform_2, window_bounds = array<i64: 1, 32>}, {pipeline_mode = #tpu.pipeline_mode<synchronous>, transform_indices = @transform_3, window_bounds = array<i64: 32, 32>}, {pipeline_mode = #tpu.pipeline_mode<synchronous>, transform_indices = @transform_4, window_bounds = array<i64: 1, 32>}, {pipeline_mode = #tpu.pipeline_mode<synchronous>, transform_indices = @transform_5, window_bounds = array<i64: 32, 128>}, {pipeline_mode = #tpu.pipeline_mode<synchronous>, transform_indices = @transform_6, window_bounds = array<i64: 1, 128>}, {transform_indices = @transform_7, window_bounds = array<i64: 16, 128>}]} {
    %c0 = arith.constant 0 : index
    %c0_0 = arith.constant 0 : index
    %0 = vector.load %arg1[%c0, %c0_0] : memref<16x64xf32, #tpu.memory_space<vmem>>, vector<16x64xf32>
    %c0_1 = arith.constant 0 : index
    %c0_2 = arith.constant 0 : index
    %1 = vector.load %arg2[%c0_1, %c0_2] : memref<64x32xf32, #tpu.memory_space<vmem>>, vector<64x32xf32>
    %cst = arith.constant dense<0.000000e+00> : vector<16x32xf32>
    %2 = tpu.matmul %0, %1, %cst {dimension_numbers = #tpu.dot_dimension_numbers<[1], [0], [0], [1], [0, 0, 1, 1], [], []>} : vector<16x64xf32>, vector<64x32xf32>, vector<16x32xf32> -> vector<16x32xf32>
    %c0_3 = arith.constant 0 : index
    %c0_4 = arith.constant 0 : index
    %3 = vector.load %arg3[%c0_3, %c0_4] : memref<1x32xf32, #tpu.memory_space<vmem>>, vector<1x32xf32>
    %4 = vector.broadcast %3 : vector<1x32xf32> to vector<16x32xf32>
    %5 = arith.addf %2, %4 : vector<16x32xf32>
    %cst_5 = arith.constant 0.000000e+00 : f32
    %6 = vector.broadcast %cst_5 : f32 to vector<16x32xf32>
    %7 = arith.maximumf %5, %6 : vector<16x32xf32>
    %c0_6 = arith.constant 0 : index
    %c0_7 = arith.constant 0 : index
    %8 = vector.load %arg4[%c0_6, %c0_7] : memref<32x32xf32, #tpu.memory_space<vmem>>, vector<32x32xf32>
    %cst_8 = arith.constant dense<0.000000e+00> : vector<16x32xf32>
    %9 = tpu.matmul %7, %8, %cst_8 {dimension_numbers = #tpu.dot_dimension_numbers<[1], [0], [0], [1], [0, 0, 1, 1], [], []>} : vector<16x32xf32>, vector<32x32xf32>, vector<16x32xf32> -> vector<16x32xf32>
    %c0_9 = arith.constant 0 : index
    %c0_10 = arith.constant 0 : index
    %10 = vector.load %arg5[%c0_9, %c0_10] : memref<1x32xf32, #tpu.memory_space<vmem>>, vector<1x32xf32>
    %11 = vector.broadcast %10 : vector<1x32xf32> to vector<16x32xf32>
    %12 = arith.addf %9, %11 : vector<16x32xf32>
    %cst_11 = arith.constant 0.000000e+00 : f32
    %13 = vector.broadcast %cst_11 : f32 to vector<16x32xf32>
    %14 = arith.maximumf %12, %13 : vector<16x32xf32>
    %c0_12 = arith.constant 0 : index
    %c0_13 = arith.constant 0 : index
    %15 = vector.load %arg6[%c0_12, %c0_13] : memref<32x128xf32, #tpu.memory_space<vmem>>, vector<32x128xf32>
    %cst_14 = arith.constant dense<0.000000e+00> : vector<16x128xf32>
    %16 = tpu.matmul %14, %15, %cst_14 {dimension_numbers = #tpu.dot_dimension_numbers<[1], [0], [0], [1], [0, 0, 1, 1], [], []>} : vector<16x32xf32>, vector<32x128xf32>, vector<16x128xf32> -> vector<16x128xf32>
    %c0_15 = arith.constant 0 : index
    %c0_16 = arith.constant 0 : index
    %17 = vector.load %arg7[%c0_15, %c0_16] : memref<1x128xf32, #tpu.memory_space<vmem>>, vector<1x128xf32>
    %18 = vector.broadcast %17 : vector<1x128xf32> to vector<16x128xf32>
    %19 = arith.addf %16, %18 : vector<16x128xf32>
    %c0_17 = arith.constant 0 : index
    %c0_18 = arith.constant 0 : index
    %20 = vector.load %arg8[%c0_17, %c0_18] : memref<16x128xf32, #tpu.memory_space<vmem>>, vector<16x128xf32>
    tpu.vector_store %arg8[%c0_17, %c0_18], %19 {strides = array<i32>} : memref<16x128xf32, #tpu.memory_space<vmem>>, vector<16x128xf32>,
    return
  }
  func.func @transform_0(%arg0: i32) -> (i32, i32) {
    %c0_i32 = arith.constant 0 : i32
    %c0_i32_0 = arith.constant 0 : i32
    return %arg0, %c0_i32 : i32, i32
  }
  func.func @transform_1(%arg0: i32) -> (i32, i32) {
    %c0_i32 = arith.constant 0 : i32
    %c0_i32_0 = arith.constant 0 : i32
    %c0_i32_1 = arith.constant 0 : i32
    return %c0_i32, %c0_i32_0 : i32, i32
  }
  func.func @transform_2(%arg0: i32) -> (i32, i32) {
    %c0_i32 = arith.constant 0 : i32
    %c0_i32_0 = arith.constant 0 : i32
    %c0_i32_1 = arith.constant 0 : i32
    return %c0_i32, %c0_i32_0 : i32, i32
  }
  func.func @transform_3(%arg0: i32) -> (i32, i32) {
    %c0_i32 = arith.constant 0 : i32
    %c0_i32_0 = arith.constant 0 : i32
    %c0_i32_1 = arith.constant 0 : i32
    return %c0_i32, %c0_i32_0 : i32, i32
  }
  func.func @transform_4(%arg0: i32) -> (i32, i32) {
    %c0_i32 = arith.constant 0 : i32
    %c0_i32_0 = arith.constant 0 : i32
    %c0_i32_1 = arith.constant 0 : i32
    return %c0_i32, %c0_i32_0 : i32, i32
  }
  func.func @transform_5(%arg0: i32) -> (i32, i32) {
    %c0_i32 = arith.constant 0 : i32
    %c0_i32_0 = arith.constant 0 : i32
    %c0_i32_1 = arith.constant 0 : i32
    return %c0_i32, %c0_i32_0 : i32, i32
  }
  func.func @transform_6(%arg0: i32) -> (i32, i32) {
    %c0_i32 = arith.constant 0 : i32
    %c0_i32_0 = arith.constant 0 : i32
    %c0_i32_1 = arith.constant 0 : i32
    return %c0_i32, %c0_i32_0 : i32, i32
  }
  func.func @transform_7(%arg0: i32) -> (i32, i32) {
    %c0_i32 = arith.constant 0 : i32
    %c0_i32_0 = arith.constant 0 : i32
    return %arg0, %c0_i32 : i32, i32
  }
}

</mosaic_0001>

<llo_original>
// kernel: tpu_custom_call.1
$region0: #{tpu_custom_call.1}
  #allocation0 [shape = 'u32[]', space=smem, size = 0x4, offset = 0x4, fixed_abs, tag = 'smem constant byte address 0x4 - core index']
  #allocation1 [shape = 'u32[144,128]{1,0:T(1,128)}', space=vmem, size = 0x12000, scoped, tag = 'internal scratch']
  %s0 = inlined_call_operand.vmem [shape: f32[16,64], index: 0, kind: input, shape index: {}]
  %s1 = inlined_call_operand.vmem [shape: f32[64,32], index: 1, kind: input, shape index: {}]
  %s2 = inlined_call_operand.vmem [shape: f32[1,32], index: 2, kind: input, shape index: {}]
  %s3 = inlined_call_operand.vmem [shape: f32[32,32], index: 3, kind: input, shape index: {}]
  %s4 = inlined_call_operand.vmem [shape: f32[1,32], index: 4, kind: input, shape index: {}]
  %s5 = inlined_call_operand.vmem [shape: f32[32,128], index: 5, kind: input, shape index: {}]
  %s6 = inlined_call_operand.vmem [shape: f32[1,128], index: 6, kind: input, shape index: {}]
  %s7 = inlined_call_operand.hbm [shape: f32[16,128], index: 7, kind: output, shape index: {}]
  %s8 = sld [smem:[#allocation0]]
  $region38: #{tpu_custom_call.1} parent=0
    _
  %s10 = ssub.s32 1, %s8
  %s11 = scalar_select 0, %s10, %s8
  $region1: #{tpu_custom_call.1} parent=0
    #allocation2 [shape = 'u8[8192]{0}', space=vmem, size = 0x2000, scoped, tag = 'output window, operand 0, single buffered']
    #allocation3 [shape = 's32[1]{0}', space=sflag, size = 0x4, scoped, tag = 'scoped memory for tpu_custom_call.1']
    %12 = vsyncpa [#allocation3], 0
    // Predicated region
    $region2: #{tpu_custom_call.1} parent=1 // pred_check
      _
    $region3: #{tpu_custom_call.1} parent=1 // pred_check_branch
      %14 = sbr.rel (0) target = $region5
    $region4: #{tpu_custom_call.1} parent=1 // pred_region
      _
    $region5: #{tpu_custom_call.1} parent=1 // pred_fallthru
      _
    // Predicated region
    $region6: #{tpu_custom_call.1} parent=1 // pred_check
      _
    $region7: #{tpu_custom_call.1} parent=1 // pred_check_branch
      %16 = sbr.rel (0) target = $region9
    $region8: #{tpu_custom_call.1} parent=1 // pred_region
      _
    $region9: #{tpu_custom_call.1} parent=1 // pred_fallthru
      _
    // Predicated region
    $region10: #{tpu_custom_call.1} parent=1 // pred_check
      _
    $region11: #{tpu_custom_call.1} parent=1 // pred_check_branch
      %18 = sbr.rel (0) target = $region13
    $region12: #{tpu_custom_call.1} parent=1 // pred_region
      _
    $region13: #{tpu_custom_call.1} parent=1 // pred_fallthru
      _
    // Predicated region
    $region14: #{tpu_custom_call.1} parent=1 // pred_check
      _
    $region15: #{tpu_custom_call.1} parent=1 // pred_check_branch
      %20 = sbr.rel (0) target = $region17
    $region16: #{tpu_custom_call.1} parent=1 // pred_region
      _
    $region17: #{tpu_custom_call.1} parent=1 // pred_fallthru
      _
    // Predicated region
    $region18: #{tpu_custom_call.1} parent=1 // pred_check
      _
    $region19: #{tpu_custom_call.1} parent=1 // pred_check_branch
      %22 = sbr.rel (0) target = $region21
    $region20: #{tpu_custom_call.1} parent=1 // pred_region
      _
    $region21: #{tpu_custom_call.1} parent=1 // pred_fallthru
      _
    // Predicated region
    $region22: #{tpu_custom_call.1} parent=1 // pred_check
      _
    $region23: #{tpu_custom_call.1} parent=1 // pred_check_branch
      %24 = sbr.rel (0) target = $region25
    $region24: #{tpu_custom_call.1} parent=1 // pred_region
      _
    $region25: #{tpu_custom_call.1} parent=1 // pred_fallthru
      _
    // Predicated region
    $region26: #{tpu_custom_call.1} parent=1 // pred_check
      _
    $region27: #{tpu_custom_call.1} parent=1 // pred_check_branch
      %26 = sbr.rel (0) target = $region29
    $region28: #{tpu_custom_call.1} parent=1 // pred_region
      _
    $region29: #{tpu_custom_call.1} parent=1 // pred_fallthru
      _
    %v27 = vld [vmem:[%s0] sm:$0xff]
    %v28 = vld [vmem:[%s0 + $0x8] sm:$0xff]
    %v29 = vld [vmem:[%s1] sm:$0xff]
    %v30 = vld [vmem:[%s1 + $0x8] sm:$0xff]
    %v31 = vld [vmem:[%s1 + $0x10] sm:$0xff]
    %v32 = vld [vmem:[%s1 + $0x18] sm:$0xff]
    %v33 = vld [vmem:[%s1 + $0x20] sm:$0xff]
    %v34 = vld [vmem:[%s1 + $0x28] sm:$0xff]
    %v35 = vld [vmem:[%s1 + $0x30] sm:$0xff]
    %v36 = vld [vmem:[%s1 + $0x38] sm:$0xff]
    %v37 = vld [vmem:[%s2] sm:$0x1]
    %v39 = vlaneseq
    %v40 = vshrl.u32 %v39, 7
    %v41 = vsub.s32 0, %v40
    %v42 = vrot.slane %v37, %v41
    %vm44 = vcmask 523264
    %v46 = vsel %vm44, %v27, 0
    %v49 = vsel %vm44, %v28, 0
    %51 = vmatprep.subr.mxu0 0.0
    %52 = vmatpush1.msra.mxu0 0.0
    %53 = vmatprep.subr.mxu0 0.0
    %54 = vmatpush1.msra.mxu0 0.0
    %55 = vmatprep.subr.mxu0 0.0
    %56 = vmatpush1.msra.mxu0 0.0
    %57 = vmatprep.subr.mxu0 0.0
    %58 = vmatpush1.msra.mxu0 0.0
    %59 = vmatprep.subr.mxu0 0.0
    %60 = vmatpush1.msra.mxu0 0.0
    %61 = vmatprep.subr.mxu0 0.0
    %62 = vmatpush1.msra.mxu0 0.0
    %63 = vmatprep.subr.mxu0 0.0
    %64 = vmatpush1.msra.mxu0 0.0
    %65 = vmatprep.subr.mxu0 0.0
    %66 = vmatpush1.msra.mxu0 0.0
    %67 = vmatprep.subr.mxu0 0.0
    %68 = vmatpush1.msra.mxu0 %v36
    %69 = vmatprep.subr.mxu0 0.0
    %70 = vmatpush1.msra.mxu0 %v35
    %71 = vmatprep.subr.mxu0 0.0
    %72 = vmatpush1.msra.mxu0 %v34
    %73 = vmatprep.subr.mxu0 0.0
    %74 = vmatpush1.msra.mxu0 %v33
    %75 = vmatprep.subr.mxu0 0.0
    %76 = vmatpush1.msra.mxu0 %v32
    %77 = vmatprep.subr.mxu0 0.0
    %78 = vmatpush1.msra.mxu0 %v31
    %79 = vmatprep.subr.mxu0 0.0
    %80 = vmatpush1.msra.mxu0 %v30
    %81 = vmatprep.subr.mxu0 0.0
    %82 = vmatpush1.msra.mxu0 %v29
    %83 = vmatprep.subr.mxu0 0.0
    %84 = vmatpush2.msra.mxu0 0.0
    %85 = vmatprep.subr.mxu0 0.0
    %86 = vmatpush2.msra.mxu0 0.0
    %87 = vmatprep.subr.mxu0 0.0
    %88 = vmatpush2.msra.mxu0 0.0
    %89 = vmatprep.subr.mxu0 0.0
    %90 = vmatpush2.msra.mxu0 0.0
    %91 = vmatprep.subr.mxu0 0.0
    %92 = vmatpush2.msra.mxu0 0.0
    %93 = vmatprep.subr.mxu0 0.0
    %94 = vmatpush2.msra.mxu0 0.0
    %95 = vmatprep.subr.mxu0 0.0
    %96 = vmatpush2.msra.mxu0 0.0
    %97 = vmatprep.subr.mxu0 0.0
    %98 = vmatpush2.msra.mxu0 0.0
    %99 = vmatprep.subr.mxu0 0.0
    %100 = vmatpush2.msra.mxu0 0.0
    %101 = vmatprep.subr.mxu0 0.0
    %102 = vmatpush2.msra.mxu0 0.0
    %103 = vmatprep.subr.mxu0 0.0
    %104 = vmatpush2.msra.mxu0 0.0
    %105 = vmatprep.subr.mxu0 0.0
    %106 = vmatpush2.msra.mxu0 0.0
    %107 = vmatprep.subr.mxu0 0.0
    %108 = vmatpush2.msra.mxu0 0.0
    %109 = vmatprep.subr.mxu0 0.0
    %110 = vmatpush2.msra.mxu0 0.0
    %111 = vmatprep.subr.mxu0 0.0
    %112 = vmatpush2.msra.mxu0 0.0
    %113 = vmatprep.subr.mxu0 0.0
    %114 = vmatpush2.msra.mxu0 0.0
    %115 = vmatprep.mubr.f32.mxu0 0.0
    %116 = vmatmul.mubr.f32.gmra.mxu0 %v46
    %v117 = vpop.f32.mrf.mxu0
    %v118 = vadd.f32 %v42, %v117
    %v119 = vpop.f32.mrf.mxu0
    %120 = vmatprep.mubr.f32.mxu0 0.0
    %121 = vmatmul.mubr.f32.gmra.mxu0 %v49
    %v122 = vpop.f32.mrf.mxu0
    %v123 = vadd.f32 %v42, %v122
    %v124 = vpop.f32.mrf.mxu0
    %125 = vdwg.mxu0
    %v126 = vmax.f32 %v118, 0.0
    %v127 = vmax.f32 %v123, 0.0
    %v128 = vld [vmem:[%s3] sm:$0xff]
    %v129 = vld [vmem:[%s3 + $0x8] sm:$0xff]
    %v130 = vld [vmem:[%s3 + $0x10] sm:$0xff]
    %v131 = vld [vmem:[%s3 + $0x18] sm:$0xff]
    %v132 = vld [vmem:[%s4] sm:$0x1]
    %v134 = vlaneseq
    %v135 = vshrl.u32 %v134, 7
    %v136 = vsub.s32 0, %v135
    %v137 = vrot.slane %v132, %v136
    %vm139 = vcmask 261120
    %v141 = vsel %vm139, %v126, 0
    %v144 = vsel %vm139, %v127, 0
    %146 = vmatprep.subr.mxu0 0.0
    %147 = vmatpush1.msra.mxu0 0.0
    %148 = vmatprep.subr.mxu0 0.0
    %149 = vmatpush1.msra.mxu0 0.0
    %150 = vmatprep.subr.mxu0 0.0
    %151 = vmatpush1.msra.mxu0 0.0
    %152 = vmatprep.subr.mxu0 0.0
    %153 = vmatpush1.msra.mxu0 0.0
    %154 = vmatprep.subr.mxu0 0.0
    %155 = vmatpush1.msra.mxu0 0.0
    %156 = vmatprep.subr.mxu0 0.0
    %157 = vmatpush1.msra.mxu0 0.0
    %158 = vmatprep.subr.mxu0 0.0
    %159 = vmatpush1.msra.mxu0 0.0
    %160 = vmatprep.subr.mxu0 0.0
    %161 = vmatpush1.msra.mxu0 0.0
    %162 = vmatprep.subr.mxu0 0.0
    %163 = vmatpush1.msra.mxu0 0.0
    %164 = vmatprep.subr.mxu0 0.0
    %165 = vmatpush1.msra.mxu0 0.0
    %166 = vmatprep.subr.mxu0 0.0
    %167 = vmatpush1.msra.mxu0 0.0
    %168 = vmatprep.subr.mxu0 0.0
    %169 = vmatpush1.msra.mxu0 0.0
    %170 = vmatprep.subr.mxu0 0.0
    %171 = vmatpush1.msra.mxu0 %v131
    %172 = vmatprep.subr.mxu0 0.0
    %173 = vmatpush1.msra.mxu0 %v130
    %174 = vmatprep.subr.mxu0 0.0
    %175 = vmatpush1.msra.mxu0 %v129
    %176 = vmatprep.subr.mxu0 0.0
    %177 = vmatpush1.msra.mxu0 %v128
    %178 = vmatprep.subr.mxu0 0.0
    %179 = vmatpush2.msra.mxu0 0.0
    %180 = vmatprep.subr.mxu0 0.0
    %181 = vmatpush2.msra.mxu0 0.0
    %182 = vmatprep.subr.mxu0 0.0
    %183 = vmatpush2.msra.mxu0 0.0
    %184 = vmatprep.subr.mxu0 0.0
    %185 = vmatpush2.msra.mxu0 0.0
    %186 = vmatprep.subr.mxu0 0.0
    %187 = vmatpush2.msra.mxu0 0.0
    %188 = vmatprep.subr.mxu0 0.0
    %189 = vmatpush2.msra.mxu0 0.0
    %190 = vmatprep.subr.mxu0 0.0
    %191 = vmatpush2.msra.mxu0 0.0
    %192 = vmatprep.subr.mxu0 0.0
    %193 = vmatpush2.msra.mxu0 0.0
    %194 = vmatprep.subr.mxu0 0.0
    %195 = vmatpush2.msra.mxu0 0.0
    %196 = vmatprep.subr.mxu0 0.0
    %197 = vmatpush2.msra.mxu0 0.0
    %198 = vmatprep.subr.mxu0 0.0
    %199 = vmatpush2.msra.mxu0 0.0
    %200 = vmatprep.subr.mxu0 0.0
    %201 = vmatpush2.msra.mxu0 0.0
    %202 = vmatprep.subr.mxu0 0.0
    %203 = vmatpush2.msra.mxu0 0.0
    %204 = vmatprep.subr.mxu0 0.0
    %205 = vmatpush2.msra.mxu0 0.0
    %206 = vmatprep.subr.mxu0 0.0
    %207 = vmatpush2.msra.mxu0 0.0
    %208 = vmatprep.subr.mxu0 0.0
    %209 = vmatpush2.msra.mxu0 0.0
    %210 = vmatprep.mubr.f32.mxu0 0.0
    %211 = vmatmul.mubr.f32.gmra.mxu0 %v141
    %v212 = vpop.f32.mrf.mxu0
    %v213 = vadd.f32 %v137, %v212
    %v214 = vpop.f32.mrf.mxu0
    %215 = vmatprep.mubr.f32.mxu0 0.0
    %216 = vmatmul.mubr.f32.gmra.mxu0 %v144
    %v217 = vpop.f32.mrf.mxu0
    %v218 = vadd.f32 %v137, %v217
    %v219 = vpop.f32.mrf.mxu0
    %220 = vdwg.mxu0
    %v221 = vmax.f32 %v213, 0.0
    %v222 = vmax.f32 %v218, 0.0
    %v223 = vld [vmem:[%s5] sm:$0xff]
    %v224 = vld [vmem:[%s5 + $0x8] sm:$0xff]
    %v225 = vld [vmem:[%s5 + $0x10] sm:$0xff]
    %v226 = vld [vmem:[%s5 + $0x18] sm:$0xff]
    %v227 = vld [vmem:[%s6] sm:$0x1]
    %v229 = vlaneseq
    %v230 = vshrl.u32 %v229, 7
    %v231 = vsub.s32 0, %v230
    %v232 = vrot.slane %v227, %v231
    %v235 = vsel %vm139, %v221, 0
    %v238 = vsel %vm139, %v222, 0
    %240 = vmatprep.subr.mxu0 0.0
    %241 = vmatpush1.msra.mxu0 0.0
    %242 = vmatprep.subr.mxu0 0.0
    %243 = vmatpush1.msra.mxu0 0.0
    %244 = vmatprep.subr.mxu0 0.0
    %245 = vmatpush1.msra.mxu0 0.0
    %246 = vmatprep.subr.mxu0 0.0
    %247 = vmatpush1.msra.mxu0 0.0
    %248 = vmatprep.subr.mxu0 0.0
    %249 = vmatpush1.msra.mxu0 0.0
    %250 = vmatprep.subr.mxu0 0.0
    %251 = vmatpush1.msra.mxu0 0.0
    %252 = vmatprep.subr.mxu0 0.0
    %253 = vmatpush1.msra.mxu0 0.0
    %254 = vmatprep.subr.mxu0 0.0
    %255 = vmatpush1.msra.mxu0 0.0
    %256 = vmatprep.subr.mxu0 0.0
    %257 = vmatpush1.msra.mxu0 0.0
    %258 = vmatprep.subr.mxu0 0.0
    %259 = vmatpush1.msra.mxu0 0.0
    %260 = vmatprep.subr.mxu0 0.0
    %261 = vmatpush1.msra.mxu0 0.0
    %262 = vmatprep.subr.mxu0 0.0
    %263 = vmatpush1.msra.mxu0 0.0
    %264 = vmatprep.subr.mxu0 0.0
    %265 = vmatpush1.msra.mxu0 %v226
    %266 = vmatprep.subr.mxu0 0.0
    %267 = vmatpush1.msra.mxu0 %v225
    %268 = vmatprep.subr.mxu0 0.0
    %269 = vmatpush1.msra.mxu0 %v224
    %270 = vmatprep.subr.mxu0 0.0
    %271 = vmatpush1.msra.mxu0 %v223
    %272 = vmatprep.subr.mxu0 0.0
    %273 = vmatpush2.msra.mxu0 0.0
    %274 = vmatprep.subr.mxu0 0.0
    %275 = vmatpush2.msra.mxu0 0.0
    %276 = vmatprep.subr.mxu0 0.0
    %277 = vmatpush2.msra.mxu0 0.0
    %278 = vmatprep.subr.mxu0 0.0
    %279 = vmatpush2.msra.mxu0 0.0
    %280 = vmatprep.subr.mxu0 0.0
    %281 = vmatpush2.msra.mxu0 0.0
    %282 = vmatprep.subr.mxu0 0.0
    %283 = vmatpush2.msra.mxu0 0.0
    %284 = vmatprep.subr.mxu0 0.0
    %285 = vmatpush2.msra.mxu0 0.0
    %286 = vmatprep.subr.mxu0 0.0
    %287 = vmatpush2.msra.mxu0 0.0
    %288 = vmatprep.subr.mxu0 0.0
    %289 = vmatpush2.msra.mxu0 0.0
    %290 = vmatprep.subr.mxu0 0.0
    %291 = vmatpush2.msra.mxu0 0.0
    %292 = vmatprep.subr.mxu0 0.0
    %293 = vmatpush2.msra.mxu0 0.0
    %294 = vmatprep.subr.mxu0 0.0
    %295 = vmatpush2.msra.mxu0 0.0
    %296 = vmatprep.subr.mxu0 0.0
    %297 = vmatpush2.msra.mxu0 0.0
    %298 = vmatprep.subr.mxu0 0.0
    %299 = vmatpush2.msra.mxu0 0.0
    %300 = vmatprep.subr.mxu0 0.0
    %301 = vmatpush2.msra.mxu0 0.0
    %302 = vmatprep.subr.mxu0 0.0
    %303 = vmatpush2.msra.mxu0 0.0
    %304 = vmatprep.mubr.f32.mxu0 0.0
    %305 = vmatmul.mubr.f32.gmra.mxu0 %v235
    %v306 = vpop.f32.mrf.mxu0
    %v307 = vadd.f32 %v232, %v306
    %v308 = vpop.f32.mrf.mxu0
    %309 = vmatprep.mubr.f32.mxu0 0.0
    %310 = vmatmul.mubr.f32.gmra.mxu0 %v238
    %v311 = vpop.f32.mrf.mxu0
    %v312 = vadd.f32 %v232, %v311
    %v313 = vpop.f32.mrf.mxu0
    %314 = vdwg.mxu0
    %315 = vst [vmem:[#allocation2] sm:$0xff] %v307
    %316 = vst [vmem:[#allocation2 + $0x8] sm:$0xff] %v312
    // Predicated region
    $region30: #{tpu_custom_call.1} parent=1 // pred_check
      _
    $region31: #{tpu_custom_call.1} parent=1 // pred_check_branch
      %318 = sbr.rel (0) target = $region33
    $region32: #{tpu_custom_call.1} parent=1 // pred_region
      %s320 = ssub.s32 256, 256
      %321 = vsyncadd [#allocation3], %s320
      %s322 = sshll.u32 [#allocation2], 4
      %s323 = int_to_ptr.vmem [resolvable:$true] %s322
      %328 = dma.vmem_to_hbm [thread:$0]  %s323, 256, %s7, [#allocation3], 128, 128, 8
    $region33: #{tpu_custom_call.1} parent=1 // pred_fallthru
      _
    // Predicated region
    $region34: #{tpu_custom_call.1} parent=1 // pred_check
      _
    $region35: #{tpu_custom_call.1} parent=1 // pred_check_branch
      %330 = sbr.rel (0) target = $region37
    $region36: #{tpu_custom_call.1} parent=1 // pred_region
      %331 = dma.done [#allocation3], 256
    $region37: #{tpu_custom_call.1} parent=1 // pred_fallthru
      _
    %332 = vsyncpa [#allocation3], 1

// kernel: tpu_custom_call.1
$region0: #{tpu_custom_call.1}
  #allocation0 [shape = 'u32[]', space=smem, size = 0x4, offset = 0x4, fixed_abs, tag = 'smem constant byte address 0x4 - core index']
  #allocation1 [shape = 'u32[144,128]{1,0:T(1,128)}', space=vmem, size = 0x12000, scoped, tag = 'internal scratch']
  %s0 = inlined_call_operand.vmem [shape: f32[16,64], index: 0, kind: input, shape index: {}]
  %s1 = inlined_call_operand.vmem [shape: f32[64,32], index: 1, kind: input, shape index: {}]
  %s2 = inlined_call_operand.vmem [shape: f32[1,32], index: 2, kind: input, shape index: {}]
  %s3 = inlined_call_operand.vmem [shape: f32[32,32], index: 3, kind: input, shape index: {}]
  %s4 = inlined_call_operand.vmem [shape: f32[1,32], index: 4, kind: input, shape index: {}]
  %s5 = inlined_call_operand.vmem [shape: f32[32,128], index: 5, kind: input, shape index: {}]
  %s6 = inlined_call_operand.vmem [shape: f32[1,128], index: 6, kind: input, shape index: {}]
  %s7 = inlined_call_operand.hbm [shape: f32[16,128], index: 7, kind: output, shape index: {}]
  %s8 = sld [smem:[#allocation0]]
  $region38: #{tpu_custom_call.1} parent=0
    _
  %s10 = ssub.s32 1, %s8
  %s11 = scalar_select 0, %s10, %s8
  $region1: #{tpu_custom_call.1} parent=0
    #allocation2 [shape = 'u8[8192]{0}', space=vmem, size = 0x2000, scoped, tag = 'output window, operand 0, single buffered']
    #allocation3 [shape = 's32[1]{0}', space=sflag, size = 0x4, scoped, tag = 'scoped memory for tpu_custom_call.1']
    %12 = vsyncpa [#allocation3], 0
    // Predicated region
    $region2: #{tpu_custom_call.1} parent=1 // pred_check
      _
    $region3: #{tpu_custom_call.1} parent=1 // pred_check_branch
      %14 = sbr.rel (0) target = $region5
    $region4: #{tpu_custom_call.1} parent=1 // pred_region
      _
    $region5: #{tpu_custom_call.1} parent=1 // pred_fallthru
      _
    // Predicated region
    $region6: #{tpu_custom_call.1} parent=1 // pred_check
      _
    $region7: #{tpu_custom_call.1} parent=1 // pred_check_branch
      %16 = sbr.rel (0) target = $region9
    $region8: #{tpu_custom_call.1} parent=1 // pred_region
      _
    $region9: #{tpu_custom_call.1} parent=1 // pred_fallthru
      _
    // Predicated region
    $region10: #{tpu_custom_call.1} parent=1 // pred_check
      _
    $region11: #{tpu_custom_call.1} parent=1 // pred_check_branch
      %18 = sbr.rel (0) target = $region13
    $region12: #{tpu_custom_call.1} parent=1 // pred_region
      _
    $region13: #{tpu_custom_call.1} parent=1 // pred_fallthru
      _
    // Predicated region
    $region14: #{tpu_custom_call.1} parent=1 // pred_check
      _
    $region15: #{tpu_custom_call.1} parent=1 // pred_check_branch
      %20 = sbr.rel (0) target = $region17
    $region16: #{tpu_custom_call.1} parent=1 // pred_region
      _
    $region17: #{tpu_custom_call.1} parent=1 // pred_fallthru
      _
    // Predicated region
    $region18: #{tpu_custom_call.1} parent=1 // pred_check
      _
    $region19: #{tpu_custom_call.1} parent=1 // pred_check_branch
      %22 = sbr.rel (0) target = $region21
    $region20: #{tpu_custom_call.1} parent=1 // pred_region
      _
    $region21: #{tpu_custom_call.1} parent=1 // pred_fallthru
      _
    // Predicated region
    $region22: #{tpu_custom_call.1} parent=1 // pred_check
      _
    $region23: #{tpu_custom_call.1} parent=1 // pred_check_branch
      %24 = sbr.rel (0) target = $region25
    $region24: #{tpu_custom_call.1} parent=1 // pred_region
      _
    $region25: #{tpu_custom_call.1} parent=1 // pred_fallthru
      _
    // Predicated region
    $region26: #{tpu_custom_call.1} parent=1 // pred_check
      _
    $region27: #{tpu_custom_call.1} parent=1 // pred_check_branch
      %26 = sbr.rel (0) target = $region29
    $region28: #{tpu_custom_call.1} parent=1 // pred_region
      _
    $region29: #{tpu_custom_call.1} parent=1 // pred_fallthru
      _
    %v27 = vld [vmem:[%s0] sm:$0xff]
    %v28 = vld [vmem:[%s0 + $0x8] sm:$0xff]
    %v29 = vld [vmem:[%s1] sm:$0xff]
    %v30 = vld [vmem:[%s1 + $0x8] sm:$0xff]
    %v31 = vld [vmem:[%s1 + $0x10] sm:$0xff]
    %v32 = vld [vmem:[%s1 + $0x18] sm:$0xff]
    %v33 = vld [vmem:[%s1 + $0x20] sm:$0xff]
    %v34 = vld [vmem:[%s1 + $0x28] sm:$0xff]
    %v35 = vld [vmem:[%s1 + $0x30] sm:$0xff]
    %v36 = vld [vmem:[%s1 + $0x38] sm:$0xff]
    %v37 = vld [vmem:[%s2] sm:$0x1]
    %v39 = vlaneseq
    %v40 = vshrl.u32 %v39, 7
    %v41 = vsub.s32 0, %v40
    %v42 = vrot.slane %v37, %v41
    %vm44 = vcmask 523264
    %v46 = vsel %vm44, %v27, 0
    %v49 = vsel %vm44, %v28, 0
    %51 = vmatprep.subr.mxu0 0.0
    %52 = vmatpush1.msra.mxu0 0.0
    %53 = vmatprep.subr.mxu0 0.0
    %54 = vmatpush1.msra.mxu0 0.0
    %55 = vmatprep.subr.mxu0 0.0
    %56 = vmatpush1.msra.mxu0 0.0
    %57 = vmatprep.subr.mxu0 0.0
    %58 = vmatpush1.msra.mxu0 0.0
    %59 = vmatprep.subr.mxu0 0.0
    %60 = vmatpush1.msra.mxu0 0.0
    %61 = vmatprep.subr.mxu0 0.0
    %62 = vmatpush1.msra.mxu0 0.0
    %63 = vmatprep.subr.mxu0 0.0
    %64 = vmatpush1.msra.mxu0 0.0
    %65 = vmatprep.subr.mxu0 0.0
    %66 = vmatpush1.msra.mxu0 0.0
    %67 = vmatprep.subr.mxu0 0.0
    %68 = vmatpush1.msra.mxu0 %v36
    %69 = vmatprep.subr.mxu0 0.0
    %70 = vmatpush1.msra.mxu0 %v35
    %71 = vmatprep.subr.mxu0 0.0
    %72 = vmatpush1.msra.mxu0 %v34
    %73 = vmatprep.subr.mxu0 0.0
    %74 = vmatpush1.msra.mxu0 %v33
    %75 = vmatprep.subr.mxu0 0.0
    %76 = vmatpush1.msra.mxu0 %v32
    %77 = vmatprep.subr.mxu0 0.0
    %78 = vmatpush1.msra.mxu0 %v31
    %79 = vmatprep.subr.mxu0 0.0
    %80 = vmatpush1.msra.mxu0 %v30
    %81 = vmatprep.subr.mxu0 0.0
    %82 = vmatpush1.msra.mxu0 %v29
    %83 = vmatprep.subr.mxu0 0.0
    %84 = vmatpush2.msra.mxu0 0.0
    %85 = vmatprep.subr.mxu0 0.0
    %86 = vmatpush2.msra.mxu0 0.0
    %87 = vmatprep.subr.mxu0 0.0
    %88 = vmatpush2.msra.mxu0 0.0
    %89 = vmatprep.subr.mxu0 0.0
    %90 = vmatpush2.msra.mxu0 0.0
    %91 = vmatprep.subr.mxu0 0.0
    %92 = vmatpush2.msra.mxu0 0.0
    %93 = vmatprep.subr.mxu0 0.0
    %94 = vmatpush2.msra.mxu0 0.0
    %95 = vmatprep.subr.mxu0 0.0
    %96 = vmatpush2.msra.mxu0 0.0
    %97 = vmatprep.subr.mxu0 0.0
    %98 = vmatpush2.msra.mxu0 0.0
    %99 = vmatprep.subr.mxu0 0.0
    %100 = vmatpush2.msra.mxu0 0.0
    %101 = vmatprep.subr.mxu0 0.0
    %102 = vmatpush2.msra.mxu0 0.0
    %103 = vmatprep.subr.mxu0 0.0
    %104 = vmatpush2.msra.mxu0 0.0
    %105 = vmatprep.subr.mxu0 0.0
    %106 = vmatpush2.msra.mxu0 0.0
    %107 = vmatprep.subr.mxu0 0.0
    %108 = vmatpush2.msra.mxu0 0.0
    %109 = vmatprep.subr.mxu0 0.0
    %110 = vmatpush2.msra.mxu0 0.0
    %111 = vmatprep.subr.mxu0 0.0
    %112 = vmatpush2.msra.mxu0 0.0
    %113 = vmatprep.subr.mxu0 0.0
    %114 = vmatpush2.msra.mxu0 0.0
    %115 = vmatprep.mubr.f32.mxu0 0.0
    %116 = vmatmul.mubr.f32.gmra.mxu0 %v46
    %v117 = vpop.f32.mrf.mxu0
    %v118 = vadd.f32 %v42, %v117
    %v119 = vpop.f32.mrf.mxu0
    %120 = vmatprep.mubr.f32.mxu0 0.0
    %121 = vmatmul.mubr.f32.gmra.mxu0 %v49
    %v122 = vpop.f32.mrf.mxu0
    %v123 = vadd.f32 %v42, %v122
    %v124 = vpop.f32.mrf.mxu0
    %125 = vdwg.mxu0
    %v126 = vmax.f32 %v118, 0.0
    %v127 = vmax.f32 %v123, 0.0
    %v128 = vld [vmem:[%s3] sm:$0xff]
    %v129 = vld [vmem:[%s3 + $0x8] sm:$0xff]
    %v130 = vld [vmem:[%s3 + $0x10] sm:$0xff]
    %v131 = vld [vmem:[%s3 + $0x18] sm:$0xff]
    %v132 = vld [vmem:[%s4] sm:$0x1]
    %v134 = vlaneseq
    %v135 = vshrl.u32 %v134, 7
    %v136 = vsub.s32 0, %v135
    %v137 = vrot.slane %v132, %v136
    %vm139 = vcmask 261120
    %v141 = vsel %vm139, %v126, 0
    %v144 = vsel %vm139, %v127, 0
    %146 = vmatprep.subr.mxu0 0.0
    %147 = vmatpush1.msra.mxu0 0.0
    %148 = vmatprep.subr.mxu0 0.0
    %149 = vmatpush1.msra.mxu0 0.0
    %150 = vmatprep.subr.mxu0 0.0
    %151 = vmatpush1.msra.mxu0 0.0
    %152 = vmatprep.subr.mxu0 0.0
    %153 = vmatpush1.msra.mxu0 0.0
    %154 = vmatprep.subr.mxu0 0.0
    %155 = vmatpush1.msra.mxu0 0.0
    %156 = vmatprep.subr.mxu0 0.0
    %157 = vmatpush1.msra.mxu0 0.0
    %158 = vmatprep.subr.mxu0 0.0
    %159 = vmatpush1.msra.mxu0 0.0
    %160 = vmatprep.subr.mxu0 0.0
    %161 = vmatpush1.msra.mxu0 0.0
    %162 = vmatprep.subr.mxu0 0.0
    %163 = vmatpush1.msra.mxu0 0.0
    %164 = vmatprep.subr.mxu0 0.0
    %165 = vmatpush1.msra.mxu0 0.0
    %166 = vmatprep.subr.mxu0 0.0
    %167 = vmatpush1.msra.mxu0 0.0
    %168 = vmatprep.subr.mxu0 0.0
    %169 = vmatpush1.msra.mxu0 0.0
    %170 = vmatprep.subr.mxu0 0.0
    %171 = vmatpush1.msra.mxu0 %v131
    %172 = vmatprep.subr.mxu0 0.0
    %173 = vmatpush1.msra.mxu0 %v130
    %174 = vmatprep.subr.mxu0 0.0
    %175 = vmatpush1.msra.mxu0 %v129
    %176 = vmatprep.subr.mxu0 0.0
    %177 = vmatpush1.msra.mxu0 %v128
    %178 = vmatprep.subr.mxu0 0.0
    %179 = vmatpush2.msra.mxu0 0.0
    %180 = vmatprep.subr.mxu0 0.0
    %181 = vmatpush2.msra.mxu0 0.0
    %182 = vmatprep.subr.mxu0 0.0
    %183 = vmatpush2.msra.mxu0 0.0
    %184 = vmatprep.subr.mxu0 0.0
    %185 = vmatpush2.msra.mxu0 0.0
    %186 = vmatprep.subr.mxu0 0.0
    %187 = vmatpush2.msra.mxu0 0.0
    %188 = vmatprep.subr.mxu0 0.0
    %189 = vmatpush2.msra.mxu0 0.0
    %190 = vmatprep.subr.mxu0 0.0
    %191 = vmatpush2.msra.mxu0 0.0
    %192 = vmatprep.subr.mxu0 0.0
    %193 = vmatpush2.msra.mxu0 0.0
    %194 = vmatprep.subr.mxu0 0.0
    %195 = vmatpush2.msra.mxu0 0.0
    %196 = vmatprep.subr.mxu0 0.0
    %197 = vmatpush2.msra.mxu0 0.0
    %198 = vmatprep.subr.mxu0 0.0
    %199 = vmatpush2.msra.mxu0 0.0
    %200 = vmatprep.subr.mxu0 0.0
    %201 = vmatpush2.msra.mxu0 0.0
    %202 = vmatprep.subr.mxu0 0.0
    %203 = vmatpush2.msra.mxu0 0.0
    %204 = vmatprep.subr.mxu0 0.0
    %205 = vmatpush2.msra.mxu0 0.0
    %206 = vmatprep.subr.mxu0 0.0
    %207 = vmatpush2.msra.mxu0 0.0
    %208 = vmatprep.subr.mxu0 0.0
    %209 = vmatpush2.msra.mxu0 0.0
    %210 = vmatprep.mubr.f32.mxu0 0.0
    %211 = vmatmul.mubr.f32.gmra.mxu0 %v141
    %v212 = vpop.f32.mrf.mxu0
    %v213 = vadd.f32 %v137, %v212
    %v214 = vpop.f32.mrf.mxu0
    %215 = vmatprep.mubr.f32.mxu0 0.0
    %216 = vmatmul.mubr.f32.gmra.mxu0 %v144
    %v217 = vpop.f32.mrf.mxu0
    %v218 = vadd.f32 %v137, %v217
    %v219 = vpop.f32.mrf.mxu0
    %220 = vdwg.mxu0
    %v221 = vmax.f32 %v213, 0.0
    %v222 = vmax.f32 %v218, 0.0
    %v223 = vld [vmem:[%s5] sm:$0xff]
    %v224 = vld [vmem:[%s5 + $0x8] sm:$0xff]
    %v225 = vld [vmem:[%s5 + $0x10] sm:$0xff]
    %v226 = vld [vmem:[%s5 + $0x18] sm:$0xff]
    %v227 = vld [vmem:[%s6] sm:$0x1]
    %v229 = vlaneseq
    %v230 = vshrl.u32 %v229, 7
    %v231 = vsub.s32 0, %v230
    %v232 = vrot.slane %v227, %v231
    %v235 = vsel %vm139, %v221, 0
    %v238 = vsel %vm139, %v222, 0
    %240 = vmatprep.subr.mxu0 0.0
    %241 = vmatpush1.msra.mxu0 0.0
    %242 = vmatprep.subr.mxu0 0.0
    %243 = vmatpush1.msra.mxu0 0.0
    %244 = vmatprep.subr.mxu0 0.0
    %245 = vmatpush1.msra.mxu0 0.0
    %246 = vmatprep.subr.mxu0 0.0
    %247 = vmatpush1.msra.mxu0 0.0
    %248 = vmatprep.subr.mxu0 0.0
    %249 = vmatpush1.msra.mxu0 0.0
    %250 = vmatprep.subr.mxu0 0.0
    %251 = vmatpush1.msra.mxu0 0.0
    %252 = vmatprep.subr.mxu0 0.0
    %253 = vmatpush1.msra.mxu0 0.0
    %254 = vmatprep.subr.mxu0 0.0
    %255 = vmatpush1.msra.mxu0 0.0
    %256 = vmatprep.subr.mxu0 0.0
    %257 = vmatpush1.msra.mxu0 0.0
    %258 = vmatprep.subr.mxu0 0.0
    %259 = vmatpush1.msra.mxu0 0.0
    %260 = vmatprep.subr.mxu0 0.0
    %261 = vmatpush1.msra.mxu0 0.0
    %262 = vmatprep.subr.mxu0 0.0
    %263 = vmatpush1.msra.mxu0 0.0
    %264 = vmatprep.subr.mxu0 0.0
    %265 = vmatpush1.msra.mxu0 %v226
    %266 = vmatprep.subr.mxu0 0.0
    %267 = vmatpush1.msra.mxu0 %v225
    %268 = vmatprep.subr.mxu0 0.0
    %269 = vmatpush1.msra.mxu0 %v224
    %270 = vmatprep.subr.mxu0 0.0
    %271 = vmatpush1.msra.mxu0 %v223
    %272 = vmatprep.subr.mxu0 0.0
    %273 = vmatpush2.msra.mxu0 0.0
    %274 = vmatprep.subr.mxu0 0.0
    %275 = vmatpush2.msra.mxu0 0.0
    %276 = vmatprep.subr.mxu0 0.0
    %277 = vmatpush2.msra.mxu0 0.0
    %278 = vmatprep.subr.mxu0 0.0
    %279 = vmatpush2.msra.mxu0 0.0
    %280 = vmatprep.subr.mxu0 0.0
    %281 = vmatpush2.msra.mxu0 0.0
    %282 = vmatprep.subr.mxu0 0.0
    %283 = vmatpush2.msra.mxu0 0.0
    %284 = vmatprep.subr.mxu0 0.0
    %285 = vmatpush2.msra.mxu0 0.0
    %286 = vmatprep.subr.mxu0 0.0
    %287 = vmatpush2.msra.mxu0 0.0
    %288 = vmatprep.subr.mxu0 0.0
    %289 = vmatpush2.msra.mxu0 0.0
    %290 = vmatprep.subr.mxu0 0.0
    %291 = vmatpush2.msra.mxu0 0.0
    %292 = vmatprep.subr.mxu0 0.0
    %293 = vmatpush2.msra.mxu0 0.0
    %294 = vmatprep.subr.mxu0 0.0
    %295 = vmatpush2.msra.mxu0 0.0
    %296 = vmatprep.subr.mxu0 0.0
    %297 = vmatpush2.msra.mxu0 0.0
    %298 = vmatprep.subr.mxu0 0.0
    %299 = vmatpush2.msra.mxu0 0.0
    %300 = vmatprep.subr.mxu0 0.0
    %301 = vmatpush2.msra.mxu0 0.0
    %302 = vmatprep.subr.mxu0 0.0
    %303 = vmatpush2.msra.mxu0 0.0
    %304 = vmatprep.mubr.f32.mxu0 0.0
    %305 = vmatmul.mubr.f32.gmra.mxu0 %v235
    %v306 = vpop.f32.mrf.mxu0
    %v307 = vadd.f32 %v232, %v306
    %v308 = vpop.f32.mrf.mxu0
    %309 = vmatprep.mubr.f32.mxu0 0.0
    %310 = vmatmul.mubr.f32.gmra.mxu0 %v238
    %v311 = vpop.f32.mrf.mxu0
    %v312 = vadd.f32 %v232, %v311
    %v313 = vpop.f32.mrf.mxu0
    %314 = vdwg.mxu0
    %315 = vst [vmem:[#allocation2] sm:$0xff] %v307
    %316 = vst [vmem:[#allocation2 + $0x8] sm:$0xff] %v312
    // Predicated region
    $region30: #{tpu_custom_call.1} parent=1 // pred_check
      _
    $region31: #{tpu_custom_call.1} parent=1 // pred_check_branch
      %318 = sbr.rel (0) target = $region33
    $region32: #{tpu_custom_call.1} parent=1 // pred_region
      %s320 = ssub.s32 256, 256
      %321 = vsyncadd [#allocation3], %s320
      %s322 = sshll.u32 [#allocation2], 4
      %s323 = int_to_ptr.vmem [resolvable:$true] %s322
      %328 = dma.vmem_to_hbm [thread:$0]  %s323, 256, %s7, [#allocation3], 128, 128, 8
    $region33: #{tpu_custom_call.1} parent=1 // pred_fallthru
      _
    // Predicated region
    $region34: #{tpu_custom_call.1} parent=1 // pred_check
      _
    $region35: #{tpu_custom_call.1} parent=1 // pred_check_branch
      %330 = sbr.rel (0) target = $region37
    $region36: #{tpu_custom_call.1} parent=1 // pred_region
      %331 = dma.done [#allocation3], 256
    $region37: #{tpu_custom_call.1} parent=1 // pred_fallthru
      _
    %332 = vsyncpa [#allocation3], 1

</llo_original>
